<compile_context>
chip_gen: v7x
topology: tpu7x:2x2x1
jax: 0.10.0
libtpu: 0.0.40
codegen_flags: <defaults>
</compile_context>

<pallas_src>
import functools

import jax
import jax.numpy as jnp
from jax.experimental import pallas as pl
from jax.experimental.pallas import tpu as pltpu


def _round_up(x, m):
    return (x + m - 1) // m * m


def _global_disc_kernel(
    y_ref, m_ref,
    w_n0_ref, b_n0_ref,        # net[0]: Linear(dim, dim)   (bf16 W, f32 b)
    w_n2_ref, b_n2_ref,        # net[2]: Linear(dim, dim)
    w0y_ref, w0h_ref, b0_ref,  # l0: Linear(2*dim, 128), weight split y/h halves
    w1_ref, b1_ref,            # l1: Linear(128, 128)
    w2_ref, b2_ref,            # l2: Linear(128, 1) -> stored as (1, 128) row
    out_ref,                   # (TB, 128) lane-dense output slab, col 0 is the result
):
    bf16 = jnp.bfloat16
    y = y_ref[...]
    m = m_ref[...]

    # h = net(M) = Linear -> ReLU -> Linear        (bf16 MXU, f32 accumulate)
    h = jnp.dot(m.astype(bf16), w_n0_ref[...],
                preferred_element_type=jnp.float32) + b_n0_ref[...]
    h = jnp.maximum(h, 0.0)
    h = jnp.dot(h.astype(bf16), w_n2_ref[...],
                preferred_element_type=jnp.float32) + b_n2_ref[...]

    # relu(l0(concat([y, h])))  ==  relu(y @ W0y + h @ W0h + b0)
    h0 = (jnp.dot(y.astype(bf16), w0y_ref[...], preferred_element_type=jnp.float32)
          + jnp.dot(h.astype(bf16), w0h_ref[...], preferred_element_type=jnp.float32)
          + b0_ref[...])
    h0 = jnp.maximum(h0, 0.0)

    # relu(l1(h0))
    h1 = jnp.dot(h0.astype(bf16), w1_ref[...],
                 preferred_element_type=jnp.float32) + b1_ref[...]
    h1 = jnp.maximum(h1, 0.0)

    # l2: Linear(128, 1) on the VPU/XLU (multiply + lane reduce); broadcast to a
    # lane-dense (TB, 128) slab to get unmasked full-width stores.
    res = jnp.sum(h1 * w2_ref[...], axis=-1, keepdims=True) + b2_ref[...]
    out_ref[...] = jnp.broadcast_to(res, out_ref.shape).astype(out_ref.dtype)


def global_discriminator_forward(y, M, params, *, batch_tile=None):
    """y: (B, dim); M: (B, ...) with prod(...) == dim. Returns (B, 1) float32."""
    B = M.shape[0]
    m_flat = M.reshape(B, -1).astype(jnp.float32)
    dim = m_flat.shape[1]
    assert y.shape == (B, dim), (y.shape, (B, dim))

    H = 128                         # hidden width of l0/l1 (already lane-aligned)
    dim_p = _round_up(dim, 128)     # pad feature dim to full lanes

    # Batch tile: multiple of 8 sublanes; default caps at 256 rows/step.
    if batch_tile is None:
        batch_tile = min(256, _round_up(B, 8))
    TB = _round_up(batch_tile, 8)
    B_pad = _round_up(B, TB)

    def pad2(x, rows, cols):
        x = jnp.asarray(x, jnp.float32)
        return jnp.pad(x, ((0, rows - x.shape[0]), (0, cols - x.shape[1])))

    bf16 = jnp.bfloat16

    # Activations (zero-pad batch + feature dims; exact).
    y_p = pad2(y, B_pad, dim_p)
    m_p = pad2(m_flat, B_pad, dim_p)

    # Weights: zero-pad to lane-aligned shapes, large ones cast to bf16.
    w_n0 = pad2(params["w_n0"], dim_p, dim_p).astype(bf16)
    b_n0 = pad2(params["b_n0"], 1, dim_p)
    w_n2 = pad2(params["w_n2"], dim_p, dim_p).astype(bf16)
    b_n2 = pad2(params["b_n2"], 1, dim_p)
    w0y = pad2(params["w0y"], dim_p, H).astype(bf16)
    w0h = pad2(params["w0h"], dim_p, H).astype(bf16)
    b0 = jnp.asarray(params["b0"], jnp.float32)
    w1 = jnp.asarray(params["w1"], bf16)
    b1 = jnp.asarray(params["b1"], jnp.float32)
    w2 = jnp.asarray(params["w2"], jnp.float32).reshape(1, H)   # row vector
    b2 = jnp.asarray(params["b2"], jnp.float32).reshape(1, 1)

    grid = (B_pad // TB,)

    def batch_spec(cols):
        return pl.BlockSpec((TB, cols), lambda i: (i, 0))

    def const_spec(rows, cols):
        return pl.BlockSpec((rows, cols), lambda i: (0, 0))

    in_specs = [
        batch_spec(dim_p),            # y
        batch_spec(dim_p),            # m
        const_spec(dim_p, dim_p),     # w_n0
        const_spec(1, dim_p),         # b_n0
        const_spec(dim_p, dim_p),     # w_n2
        const_spec(1, dim_p),         # b_n2
        const_spec(dim_p, H),         # w0y
        const_spec(dim_p, H),         # w0h
        const_spec(1, H),             # b0
        const_spec(H, H),             # w1
        const_spec(1, H),             # b1
        const_spec(1, H),             # w2 (row)
        const_spec(1, 1),             # b2
    ]
    out_spec = pl.BlockSpec((TB, H), lambda i: (i, 0))

    # Advisory cost estimate for the XLA scheduler.
    flops = 2 * B_pad * (2 * dim_p * dim_p + 2 * dim_p * H + H * H + H)
    weight_bytes = (2 * dim_p * dim_p + 2 * dim_p * H + H * H) * 2  # bf16
    act_bytes = B_pad * (2 * dim_p * 4 + H * 4)
    cost = pl.CostEstimate(flops=flops, transcendentals=0,
                           bytes_accessed=weight_bytes + act_bytes)

    # VMEM budget: resident weights + double-buffered activation tiles, with
    # headroom, capped safely below v7x's 64 MiB physical VMEM.
    resident = weight_bytes + 2 * 2 * TB * (2 * dim_p + H) * 4
    vmem_limit = int(max(16 << 20, min(2 * resident + (4 << 20), 56 << 20)))

    out_padded = pl.pallas_call(
        _global_disc_kernel,
        out_shape=jax.ShapeDtypeStruct((B_pad, H), jnp.float32),
        grid=grid,
        in_specs=in_specs,
        out_specs=out_spec,
        compiler_params=pltpu.CompilerParams(
            dimension_semantics=("parallel",),
            vmem_limit_bytes=vmem_limit,
        ),
        cost_estimate=cost,
    )(y_p, m_p, w_n0, b_n0, w_n2, b_n2, w0y, w0h, b0, w1, b1, w2, b2)

    return out_padded[:B, :1]


def init_params(dim, key):
    """Parameter init matching the nn.Module shapes.

    Weights are stored transposed relative to PyTorch, i.e. (in, out), and
    l0's weight is split into its y- and h- halves along the input dim.
    Biases are stored as (1, out).
    """
    keys = jax.random.split(key, 10)

    def lin(kw, kb, fan_in, fan_out):
        bound = 1.0 / jnp.sqrt(fan_in)
        w = jax.random.uniform(kw, (fan_in, fan_out), jnp.float32, -bound, bound)
        b = jax.random.uniform(kb, (1, fan_out), jnp.float32, -bound, bound)
        return w, b

    w_n0, b_n0 = lin(keys[0], keys[1], dim, dim)
    w_n2, b_n2 = lin(keys[2], keys[3], dim, dim)
    w0,   b0   = lin(keys[4], keys[5], 2 * dim, 128)
    w1,   b1   = lin(keys[6], keys[7], 128, 128)
    w2,   b2   = lin(keys[8], keys[9], 128, 1)

    return {
        "w_n0": w_n0, "b_n0": b_n0,
        "w_n2": w_n2, "b_n2": b_n2,
        "w0y": w0[:dim, :], "w0h": w0[dim:, :], "b0": b0,
        "w1": w1, "b1": b1,
        "w2": w2, "b2": b2,
    }


def _reference_forward(y, M, params, *, low_precision=True):
    """Pure-JAX reference. With low_precision=True it mirrors the kernel's
    bf16-operand / f32-accumulate matmuls so the comparison is apples-to-apples."""
    cast = (lambda x: x.astype(jnp.bfloat16)) if low_precision else (lambda x: x)

    def dot(a, b):
        return jnp.dot(cast(a), cast(b), preferred_element_type=jnp.float32)

    m = M.reshape(M.shape[0], -1).astype(jnp.float32)
    h = jnp.maximum(dot(m, params["w_n0"]) + params["b_n0"], 0.0)
    h = dot(h, params["w_n2"]) + params["b_n2"]
    h0 = jnp.maximum(dot(y, params["w0y"]) + dot(h, params["w0h"]) + params["b0"], 0.0)
    h1 = jnp.maximum(dot(h0, params["w1"]) + params["b1"], 0.0)
    return jnp.sum(h1 * params["w2"].reshape(1, -1), axis=-1, keepdims=True) + \
        params["b2"].reshape(1, 1)


if __name__ == "__main__":
    key = jax.random.PRNGKey(0)
    k_y, k_m, k_p = jax.random.split(key, 3)

    # Small shapes consistent with the module: M is (B, C, S), dim = C*S.
    B, C, S = 8, 4, 8
    dim = C * S

    y = jax.random.normal(k_y, (B, dim), dtype=jnp.float32)
    M = jax.random.normal(k_m, (B, C, S), dtype=jnp.float32)
    params = init_params(dim, k_p)

    out = global_discriminator_forward(y, M, params)
    out = jax.block_until_ready(out)
    ref = _reference_forward(y, M, params)
    assert out.shape == (B, 1)
    assert jnp.allclose(out, ref, atol=2e-2, rtol=2e-2), \
        f"mismatch: max abs err {jnp.max(jnp.abs(out - ref))}"

    # Exercise a multi-step grid + non-divisible batch (padded final tile).
    B2 = 20
    y2 = jax.random.normal(jax.random.PRNGKey(1), (B2, dim), dtype=jnp.float32)
    M2 = jax.random.normal(jax.random.PRNGKey(2), (B2, C, S), dtype=jnp.float32)
    out2 = global_discriminator_forward(y2, M2, params, batch_tile=8)
    out2 = jax.block_until_ready(out2)
    ref2 = _reference_forward(y2, M2, params)
    assert out2.shape == (B2, 1)
    assert jnp.allclose(out2, ref2, atol=2e-2, rtol=2e-2), \
        f"mismatch: max abs err {jnp.max(jnp.abs(out2 - ref2))}"

    print("KERNEL_OK")
</pallas_src>

<mosaic_0001>
module attributes {stable_mosaic.version = 11 : i64} {
  func.func @_global_disc_kernel(%arg0: i32, %arg1: memref<8x128xf32, #tpu.memory_space<vmem>>, %arg2: memref<8x128xf32, #tpu.memory_space<vmem>>, %arg3: memref<128x128xbf16, #tpu.memory_space<vmem>>, %arg4: memref<1x128xf32, #tpu.memory_space<vmem>>, %arg5: memref<128x128xbf16, #tpu.memory_space<vmem>>, %arg6: memref<1x128xf32, #tpu.memory_space<vmem>>, %arg7: memref<128x128xbf16, #tpu.memory_space<vmem>>, %arg8: memref<128x128xbf16, #tpu.memory_space<vmem>>, %arg9: memref<1x128xf32, #tpu.memory_space<vmem>>, %arg10: memref<128x128xbf16, #tpu.memory_space<vmem>>, %arg11: memref<1x128xf32, #tpu.memory_space<vmem>>, %arg12: memref<1x128xf32, #tpu.memory_space<vmem>>, %arg13: memref<1x1xf32, #tpu.memory_space<vmem>>, %arg14: memref<8x128xf32, #tpu.memory_space<vmem>>) attributes {dimension_semantics = [#tpu.dimension_semantics<parallel>], iteration_bounds = array<i64: 1>, scalar_prefetch = 0 : i64, scratch_operands = 0 : i64, tpu.core_type = #tpu.core_type<tc>, window_params = [{transform_indices = @transform_0, window_bounds = array<i64: 8, 128>}, {transform_indices = @transform_1, window_bounds = array<i64: 8, 128>}, {pipeline_mode = #tpu.pipeline_mode<synchronous>, transform_indices = @transform_2, window_bounds = array<i64: 128, 128>}, {pipeline_mode = #tpu.pipeline_mode<synchronous>, transform_indices = @transform_3, window_bounds = array<i64: 1, 128>}, {pipeline_mode = #tpu.pipeline_mode<synchronous>, transform_indices = @transform_4, window_bounds = array<i64: 128, 128>}, {pipeline_mode = #tpu.pipeline_mode<synchronous>, transform_indices = @transform_5, window_bounds = array<i64: 1, 128>}, {pipeline_mode = #tpu.pipeline_mode<synchronous>, transform_indices = @transform_6, window_bounds = array<i64: 128, 128>}, {pipeline_mode = #tpu.pipeline_mode<synchronous>, transform_indices = @transform_7, window_bounds = array<i64: 128, 128>}, {pipeline_mode = #tpu.pipeline_mode<synchronous>, transform_indices = @transform_8, window_bounds = array<i64: 1, 128>}, {pipeline_mode = #tpu.pipeline_mode<synchronous>, transform_indices = @transform_9, window_bounds = array<i64: 128, 128>}, {pipeline_mode = #tpu.pipeline_mode<synchronous>, transform_indices = @transform_10, window_bounds = array<i64: 1, 128>}, {pipeline_mode = #tpu.pipeline_mode<synchronous>, transform_indices = @transform_11, window_bounds = array<i64: 1, 128>}, {pipeline_mode = #tpu.pipeline_mode<synchronous>, transform_indices = @transform_12, window_bounds = array<i64: 1, 1>}, {transform_indices = @transform_13, window_bounds = array<i64: 8, 128>}]} {
    %c0 = arith.constant 0 : index
    %c0_0 = arith.constant 0 : index
    %0 = vector.load %arg1[%c0, %c0_0] : memref<8x128xf32, #tpu.memory_space<vmem>>, vector<8x128xf32>
    %c0_1 = arith.constant 0 : index
    %c0_2 = arith.constant 0 : index
    %1 = vector.load %arg2[%c0_1, %c0_2] : memref<8x128xf32, #tpu.memory_space<vmem>>, vector<8x128xf32>
    %2 = arith.truncf %1 : vector<8x128xf32> to vector<8x128xbf16>
    %c0_3 = arith.constant 0 : index
    %c0_4 = arith.constant 0 : index
    %3 = vector.load %arg3[%c0_3, %c0_4] : memref<128x128xbf16, #tpu.memory_space<vmem>>, vector<128x128xbf16>
    %cst = arith.constant dense<0.000000e+00> : vector<8x128xf32>
    %4 = tpu.matmul %2, %3, %cst {dimension_numbers = #tpu.dot_dimension_numbers<[1], [0], [0], [1], [0, 0, 1, 1], [], []>} : vector<8x128xbf16>, vector<128x128xbf16>, vector<8x128xf32> -> vector<8x128xf32>
    %c0_5 = arith.constant 0 : index
    %c0_6 = arith.constant 0 : index
    %5 = vector.load %arg4[%c0_5, %c0_6] : memref<1x128xf32, #tpu.memory_space<vmem>>, vector<1x128xf32>
    %6 = vector.broadcast %5 : vector<1x128xf32> to vector<8x128xf32>
    %7 = arith.addf %4, %6 : vector<8x128xf32>
    %cst_7 = arith.constant 0.000000e+00 : f32
    %8 = vector.broadcast %cst_7 : f32 to vector<8x128xf32>
    %9 = arith.maximumf %7, %8 : vector<8x128xf32>
    %10 = arith.truncf %9 : vector<8x128xf32> to vector<8x128xbf16>
    %c0_8 = arith.constant 0 : index
    %c0_9 = arith.constant 0 : index
    %11 = vector.load %arg5[%c0_8, %c0_9] : memref<128x128xbf16, #tpu.memory_space<vmem>>, vector<128x128xbf16>
    %cst_10 = arith.constant dense<0.000000e+00> : vector<8x128xf32>
    %12 = tpu.matmul %10, %11, %cst_10 {dimension_numbers = #tpu.dot_dimension_numbers<[1], [0], [0], [1], [0, 0, 1, 1], [], []>} : vector<8x128xbf16>, vector<128x128xbf16>, vector<8x128xf32> -> vector<8x128xf32>
    %c0_11 = arith.constant 0 : index
    %c0_12 = arith.constant 0 : index
    %13 = vector.load %arg6[%c0_11, %c0_12] : memref<1x128xf32, #tpu.memory_space<vmem>>, vector<1x128xf32>
    %14 = vector.broadcast %13 : vector<1x128xf32> to vector<8x128xf32>
    %15 = arith.addf %12, %14 : vector<8x128xf32>
    %16 = arith.truncf %0 : vector<8x128xf32> to vector<8x128xbf16>
    %c0_13 = arith.constant 0 : index
    %c0_14 = arith.constant 0 : index
    %17 = vector.load %arg7[%c0_13, %c0_14] : memref<128x128xbf16, #tpu.memory_space<vmem>>, vector<128x128xbf16>
    %cst_15 = arith.constant dense<0.000000e+00> : vector<8x128xf32>
    %18 = tpu.matmul %16, %17, %cst_15 {dimension_numbers = #tpu.dot_dimension_numbers<[1], [0], [0], [1], [0, 0, 1, 1], [], []>} : vector<8x128xbf16>, vector<128x128xbf16>, vector<8x128xf32> -> vector<8x128xf32>
    %19 = arith.truncf %15 : vector<8x128xf32> to vector<8x128xbf16>
    %c0_16 = arith.constant 0 : index
    %c0_17 = arith.constant 0 : index
    %20 = vector.load %arg8[%c0_16, %c0_17] : memref<128x128xbf16, #tpu.memory_space<vmem>>, vector<128x128xbf16>
    %cst_18 = arith.constant dense<0.000000e+00> : vector<8x128xf32>
    %21 = tpu.matmul %19, %20, %cst_18 {dimension_numbers = #tpu.dot_dimension_numbers<[1], [0], [0], [1], [0, 0, 1, 1], [], []>} : vector<8x128xbf16>, vector<128x128xbf16>, vector<8x128xf32> -> vector<8x128xf32>
    %22 = arith.addf %18, %21 : vector<8x128xf32>
    %c0_19 = arith.constant 0 : index
    %c0_20 = arith.constant 0 : index
    %23 = vector.load %arg9[%c0_19, %c0_20] : memref<1x128xf32, #tpu.memory_space<vmem>>, vector<1x128xf32>
    %24 = vector.broadcast %23 : vector<1x128xf32> to vector<8x128xf32>
    %25 = arith.addf %22, %24 : vector<8x128xf32>
    %cst_21 = arith.constant 0.000000e+00 : f32
    %26 = vector.broadcast %cst_21 : f32 to vector<8x128xf32>
    %27 = arith.maximumf %25, %26 : vector<8x128xf32>
    %28 = arith.truncf %27 : vector<8x128xf32> to vector<8x128xbf16>
    %c0_22 = arith.constant 0 : index
    %c0_23 = arith.constant 0 : index
    %29 = vector.load %arg10[%c0_22, %c0_23] : memref<128x128xbf16, #tpu.memory_space<vmem>>, vector<128x128xbf16>
    %cst_24 = arith.constant dense<0.000000e+00> : vector<8x128xf32>
    %30 = tpu.matmul %28, %29, %cst_24 {dimension_numbers = #tpu.dot_dimension_numbers<[1], [0], [0], [1], [0, 0, 1, 1], [], []>} : vector<8x128xbf16>, vector<128x128xbf16>, vector<8x128xf32> -> vector<8x128xf32>
    %c0_25 = arith.constant 0 : index
    %c0_26 = arith.constant 0 : index
    %31 = vector.load %arg11[%c0_25, %c0_26] : memref<1x128xf32, #tpu.memory_space<vmem>>, vector<1x128xf32>
    %32 = vector.broadcast %31 : vector<1x128xf32> to vector<8x128xf32>
    %33 = arith.addf %30, %32 : vector<8x128xf32>
    %cst_27 = arith.constant 0.000000e+00 : f32
    %34 = vector.broadcast %cst_27 : f32 to vector<8x128xf32>
    %35 = arith.maximumf %33, %34 : vector<8x128xf32>
    %c0_28 = arith.constant 0 : index
    %c0_29 = arith.constant 0 : index
    %36 = vector.load %arg12[%c0_28, %c0_29] : memref<1x128xf32, #tpu.memory_space<vmem>>, vector<1x128xf32>
    %37 = vector.broadcast %36 : vector<1x128xf32> to vector<8x128xf32>
    %38 = arith.mulf %35, %37 : vector<8x128xf32>
    %cst_30 = arith.constant dense<0.000000e+00> : vector<8xf32>
    %39 = vector.multi_reduction <add>, %38, %cst_30 [1] : vector<8x128xf32> to vector<8xf32>
    %40 = vector.shape_cast %39 : vector<8xf32> to vector<8x1xf32>
    %c0_31 = arith.constant 0 : index
    %c0_32 = arith.constant 0 : index
    %41 = vector.load %arg13[%c0_31, %c0_32] : memref<1x1xf32, #tpu.memory_space<vmem>>, vector<1x1xf32>
    %42 = vector.broadcast %41 : vector<1x1xf32> to vector<8x1xf32>
    %43 = arith.addf %40, %42 : vector<8x1xf32>
    %44 = vector.shape_cast %43 : vector<8x1xf32> to vector<8x1xf32>
    %45 = vector.broadcast %44 : vector<8x1xf32> to vector<8x128xf32>
    %c0_33 = arith.constant 0 : index
    %c0_34 = arith.constant 0 : index
    %46 = vector.load %arg14[%c0_33, %c0_34] : memref<8x128xf32, #tpu.memory_space<vmem>>, vector<8x128xf32>
    tpu.vector_store %arg14[%c0_33, %c0_34], %45 {strides = array<i32>} : memref<8x128xf32, #tpu.memory_space<vmem>>, vector<8x128xf32>,
    return
  }
  func.func @transform_0(%arg0: i32) -> (i32, i32) {
    %c0_i32 = arith.constant 0 : i32
    %c0_i32_0 = arith.constant 0 : i32
    return %arg0, %c0_i32 : i32, i32
  }
  func.func @transform_1(%arg0: i32) -> (i32, i32) {
    %c0_i32 = arith.constant 0 : i32
    %c0_i32_0 = arith.constant 0 : i32
    return %arg0, %c0_i32 : i32, i32
  }
  func.func @transform_2(%arg0: i32) -> (i32, i32) {
    %c0_i32 = arith.constant 0 : i32
    %c0_i32_0 = arith.constant 0 : i32
    %c0_i32_1 = arith.constant 0 : i32
    return %c0_i32, %c0_i32_0 : i32, i32
  }
  func.func @transform_3(%arg0: i32) -> (i32, i32) {
    %c0_i32 = arith.constant 0 : i32
    %c0_i32_0 = arith.constant 0 : i32
    %c0_i32_1 = arith.constant 0 : i32
    return %c0_i32, %c0_i32_0 : i32, i32
  }
  func.func @transform_4(%arg0: i32) -> (i32, i32) {
    %c0_i32 = arith.constant 0 : i32
    %c0_i32_0 = arith.constant 0 : i32
    %c0_i32_1 = arith.constant 0 : i32
    return %c0_i32, %c0_i32_0 : i32, i32
  }
  func.func @transform_5(%arg0: i32) -> (i32, i32) {
    %c0_i32 = arith.constant 0 : i32
    %c0_i32_0 = arith.constant 0 : i32
    %c0_i32_1 = arith.constant 0 : i32
    return %c0_i32, %c0_i32_0 : i32, i32
  }
  func.func @transform_6(%arg0: i32) -> (i32, i32) {
    %c0_i32 = arith.constant 0 : i32
    %c0_i32_0 = arith.constant 0 : i32
    %c0_i32_1 = arith.constant 0 : i32
    return %c0_i32, %c0_i32_0 : i32, i32
  }
  func.func @transform_7(%arg0: i32) -> (i32, i32) {
    %c0_i32 = arith.constant 0 : i32
    %c0_i32_0 = arith.constant 0 : i32
    %c0_i32_1 = arith.constant 0 : i32
    return %c0_i32, %c0_i32_0 : i32, i32
  }
  func.func @transform_8(%arg0: i32) -> (i32, i32) {
    %c0_i32 = arith.constant 0 : i32
    %c0_i32_0 = arith.constant 0 : i32
    %c0_i32_1 = arith.constant 0 : i32
    return %c0_i32, %c0_i32_0 : i32, i32
  }
  func.func @transform_9(%arg0: i32) -> (i32, i32) {
    %c0_i32 = arith.constant 0 : i32
    %c0_i32_0 = arith.constant 0 : i32
    %c0_i32_1 = arith.constant 0 : i32
    return %c0_i32, %c0_i32_0 : i32, i32
  }
  func.func @transform_10(%arg0: i32) -> (i32, i32) {
    %c0_i32 = arith.constant 0 : i32
    %c0_i32_0 = arith.constant 0 : i32
    %c0_i32_1 = arith.constant 0 : i32
    return %c0_i32, %c0_i32_0 : i32, i32
  }
  func.func @transform_11(%arg0: i32) -> (i32, i32) {
    %c0_i32 = arith.constant 0 : i32
    %c0_i32_0 = arith.constant 0 : i32
    %c0_i32_1 = arith.constant 0 : i32
    return %c0_i32, %c0_i32_0 : i32, i32
  }
  func.func @transform_12(%arg0: i32) -> (i32, i32) {
    %c0_i32 = arith.constant 0 : i32
    %c0_i32_0 = arith.constant 0 : i32
    %c0_i32_1 = arith.constant 0 : i32
    return %c0_i32, %c0_i32_0 : i32, i32
  }
  func.func @transform_13(%arg0: i32) -> (i32, i32) {
    %c0_i32 = arith.constant 0 : i32
    %c0_i32_0 = arith.constant 0 : i32
    return %arg0, %c0_i32 : i32, i32
  }
}

</mosaic_0001>

<llo_original>
// kernel: tpu_custom_call.1
$region0: #{tpu_custom_call.1}
  #allocation0 [shape = 'u32[]', space=smem, size = 0x4, offset = 0x4, fixed_abs, tag = 'smem constant byte address 0x4 - core index']
  #allocation1 [shape = 'u32[144,128]{1,0:T(1,128)}', space=vmem, size = 0x12000, scoped, tag = 'internal scratch']
  #allocation2 [shape = 'f32[1,1]{1,0:T(1,128)S(1)}', space=vmem, size = 0x200, scoped, tag = 'scoped memory for tpu_custom_call.1']
  %s0 = inlined_call_operand.hbm [shape: f32[8,128], index: 0, kind: input, shape index: {}]
  %s1 = inlined_call_operand.hbm [shape: f32[8,128], index: 1, kind: input, shape index: {}]
  %s2 = inlined_call_operand.hbm [shape: bf16[128,128], index: 2, kind: input, shape index: {}]
  %s3 = inlined_call_operand.vmem [shape: f32[1,128], index: 3, kind: input, shape index: {}]
  %s4 = inlined_call_operand.hbm [shape: bf16[128,128], index: 4, kind: input, shape index: {}]
  %s5 = inlined_call_operand.vmem [shape: f32[1,128], index: 5, kind: input, shape index: {}]
  %s6 = inlined_call_operand.hbm [shape: bf16[128,128], index: 6, kind: input, shape index: {}]
  %s7 = inlined_call_operand.hbm [shape: bf16[128,128], index: 7, kind: input, shape index: {}]
  %s8 = inlined_call_operand.vmem [shape: f32[1,128], index: 8, kind: input, shape index: {}]
  %s9 = inlined_call_operand.hbm [shape: bf16[128,128], index: 9, kind: input, shape index: {}]
  %s10 = inlined_call_operand.vmem [shape: f32[1,128], index: 10, kind: input, shape index: {}]
  %s11 = inlined_call_operand.vmem [shape: f32[1,128], index: 11, kind: input, shape index: {}]
  %s12 = inlined_call_operand.<no memory space> [shape: f32[1,1], index: 12, kind: input, shape index: {}]
  %s13 = inlined_call_operand.hbm [shape: f32[8,128], index: 13, kind: output, shape index: {}]
  %s14 = sld [smem:[#allocation0]]
  $region90: #{tpu_custom_call.1} parent=0
    _
  %s16 = ssub.s32 1, %s14
  %s17 = scalar_select 0, %s16, %s14
  %v18 = vstv %s12
  %19 = vst [vmem:[#allocation2] sm:$0x1] %v18
  $region1: #{tpu_custom_call.1} parent=0
    #allocation3 [shape = 'u8[4096]{0}', space=vmem, size = 0x1000, scoped, tag = 'input window, operand 0, single buffered']
    #allocation4 [shape = 's32[1]{0}', space=sflag, size = 0x4, scoped, tag = 'scoped memory for tpu_custom_call.1']
    #allocation5 [shape = 's32[1]{0}', space=sflag, size = 0x4, scoped, tag = 'scoped memory for tpu_custom_call.1']
    #allocation6 [shape = 'u8[4096]{0}', space=vmem, size = 0x1000, scoped, tag = 'input window, operand 1, single buffered']
    #allocation7 [shape = 's32[1]{0}', space=sflag, size = 0x4, scoped, tag = 'scoped memory for tpu_custom_call.1']
    #allocation8 [shape = 'u8[32768]{0}', space=vmem, size = 0x8000, scoped, tag = 'input window, operand 2, single buffered']
    #allocation9 [shape = 'u8[32768]{0}', space=vmem, size = 0x8000, scoped, tag = 'input window, operand 4, single buffered']
    #allocation10 [shape = 's32[1]{0}', space=sflag, size = 0x4, scoped, tag = 'scoped memory for tpu_custom_call.1']
    #allocation11 [shape = 'u8[32768]{0}', space=vmem, size = 0x8000, scoped, tag = 'input window, operand 6, single buffered']
    #allocation12 [shape = 'u8[32768]{0}', space=vmem, size = 0x8000, scoped, tag = 'input window, operand 7, single buffered']
    #allocation13 [shape = 's32[1]{0}', space=sflag, size = 0x4, scoped, tag = 'scoped memory for tpu_custom_call.1']
    #allocation14 [shape = 'u8[32768]{0}', space=vmem, size = 0x8000, scoped, tag = 'input window, operand 9, single buffered']
    #allocation15 [shape = 'u8[4096]{0}', space=vmem, size = 0x1000, scoped, tag = 'output window, operand 0, single buffered']
    %20 = vsyncpa [#allocation4], 0
    %21 = vsyncpa [#allocation7], 0
    %22 = vsyncpa [#allocation10], 0
    %23 = vsyncpa [#allocation13], 0
    %24 = vsyncpa [#allocation5], 0
    // Predicated region
    $region2: #{tpu_custom_call.1} parent=1 // pred_check
      _
    $region3: #{tpu_custom_call.1} parent=1 // pred_check_branch
      %26 = sbr.rel (0) target = $region5
    $region4: #{tpu_custom_call.1} parent=1 // pred_region
      %s28 = ssub.s32 128, 128
      %29 = vsyncadd [#allocation4], %s28
      %s31 = sshll.u32 [#allocation3], 4
      %s32 = int_to_ptr.vmem [resolvable:$true] %s31
      %34 = dma.hbm_to_vmem [thread:$0]  %s0, 128, %s32, [#allocation4]
    $region5: #{tpu_custom_call.1} parent=1 // pred_fallthru
      _
    // Predicated region
    $region6: #{tpu_custom_call.1} parent=1 // pred_check
      _
    $region7: #{tpu_custom_call.1} parent=1 // pred_check_branch
      %36 = sbr.rel (0) target = $region9
    $region8: #{tpu_custom_call.1} parent=1 // pred_region
      %s38 = ssub.s32 128, 128
      %39 = vsyncadd [#allocation7], %s38
      %s41 = sshll.u32 [#allocation6], 4
      %s42 = int_to_ptr.vmem [resolvable:$true] %s41
      %44 = dma.hbm_to_vmem [thread:$0]  %s1, 128, %s42, [#allocation7]
    $region9: #{tpu_custom_call.1} parent=1 // pred_fallthru
      _
    // Predicated region
    $region10: #{tpu_custom_call.1} parent=1 // pred_check
      _
    $region11: #{tpu_custom_call.1} parent=1 // pred_check_branch
      %46 = sbr.rel (0) target = $region13
    $region12: #{tpu_custom_call.1} parent=1 // pred_region
      %s48 = ssub.s32 1024, 1024
      %49 = vsyncadd [#allocation7], %s48
      %s50 = sshll.u32 [#allocation8], 4
      %s51 = int_to_ptr.vmem [resolvable:$true] %s50
      %56 = dma.hbm_to_vmem [thread:$0]  %s2, 1024, %s51, [#allocation7], 64, 64, 4
    $region13: #{tpu_custom_call.1} parent=1 // pred_fallthru
      _
    // Predicated region
    $region14: #{tpu_custom_call.1} parent=1 // pred_check
      _
    $region15: #{tpu_custom_call.1} parent=1 // pred_check_branch
      %58 = sbr.rel (0) target = $region17
    $region16: #{tpu_custom_call.1} parent=1 // pred_region
      _
    $region17: #{tpu_custom_call.1} parent=1 // pred_fallthru
      _
    // Predicated region
    $region18: #{tpu_custom_call.1} parent=1 // pred_check
      _
    $region19: #{tpu_custom_call.1} parent=1 // pred_check_branch
      %60 = sbr.rel (0) target = $region21
    $region20: #{tpu_custom_call.1} parent=1 // pred_region
      %s62 = ssub.s32 1024, 1024
      %63 = vsyncadd [#allocation10], %s62
      %s64 = sshll.u32 [#allocation9], 4
      %s65 = int_to_ptr.vmem [resolvable:$true] %s64
      %70 = dma.hbm_to_vmem [thread:$0]  %s4, 1024, %s65, [#allocation10], 64, 64, 4
    $region21: #{tpu_custom_call.1} parent=1 // pred_fallthru
      _
    // Predicated region
    $region22: #{tpu_custom_call.1} parent=1 // pred_check
      _
    $region23: #{tpu_custom_call.1} parent=1 // pred_check_branch
      %72 = sbr.rel (0) target = $region25
    $region24: #{tpu_custom_call.1} parent=1 // pred_region
      _
    $region25: #{tpu_custom_call.1} parent=1 // pred_fallthru
      _
    // Predicated region
    $region26: #{tpu_custom_call.1} parent=1 // pred_check
      _
    $region27: #{tpu_custom_call.1} parent=1 // pred_check_branch
      %74 = sbr.rel (0) target = $region29
    $region28: #{tpu_custom_call.1} parent=1 // pred_region
      %s76 = ssub.s32 1024, 1024
      %77 = vsyncadd [#allocation10], %s76
      %s78 = sshll.u32 [#allocation11], 4
      %s79 = int_to_ptr.vmem [resolvable:$true] %s78
      %84 = dma.hbm_to_vmem [thread:$0]  %s6, 1024, %s79, [#allocation10], 64, 64, 4
    $region29: #{tpu_custom_call.1} parent=1 // pred_fallthru
      _
    // Predicated region
    $region30: #{tpu_custom_call.1} parent=1 // pred_check
      _
    $region31: #{tpu_custom_call.1} parent=1 // pred_check_branch
      %86 = sbr.rel (0) target = $region33
    $region32: #{tpu_custom_call.1} parent=1 // pred_region
      %s88 = ssub.s32 1024, 1024
      %89 = vsyncadd [#allocation13], %s88
      %s90 = sshll.u32 [#allocation12], 4
      %s91 = int_to_ptr.vmem [resolvable:$true] %s90
      %96 = dma.hbm_to_vmem [thread:$0]  %s7, 1024, %s91, [#allocation13], 64, 64, 4
    $region33: #{tpu_custom_call.1} parent=1 // pred_fallthru
      _
    // Predicated region
    $region34: #{tpu_custom_call.1} parent=1 // pred_check
      _
    $region35: #{tpu_custom_call.1} parent=1 // pred_check_branch
      %98 = sbr.rel (0) target = $region37
    $region36: #{tpu_custom_call.1} parent=1 // pred_region
      _
    $region37: #{tpu_custom_call.1} parent=1 // pred_fallthru
      _
    // Predicated region
    $region38: #{tpu_custom_call.1} parent=1 // pred_check
      _
    $region39: #{tpu_custom_call.1} parent=1 // pred_check_branch
      %100 = sbr.rel (0) target = $region41
    $region40: #{tpu_custom_call.1} parent=1 // pred_region
      %s102 = ssub.s32 1024, 1024
      %103 = vsyncadd [#allocation13], %s102
      %s104 = sshll.u32 [#allocation14], 4
      %s105 = int_to_ptr.vmem [resolvable:$true] %s104
      %110 = dma.hbm_to_vmem [thread:$0]  %s9, 1024, %s105, [#allocation13], 64, 64, 4
    $region41: #{tpu_custom_call.1} parent=1 // pred_fallthru
      _
    // Predicated region
    $region42: #{tpu_custom_call.1} parent=1 // pred_check
      _
    $region43: #{tpu_custom_call.1} parent=1 // pred_check_branch
      %112 = sbr.rel (0) target = $region45
    $region44: #{tpu_custom_call.1} parent=1 // pred_region
      _
    $region45: #{tpu_custom_call.1} parent=1 // pred_fallthru
      _
    // Predicated region
    $region46: #{tpu_custom_call.1} parent=1 // pred_check
      _
    $region47: #{tpu_custom_call.1} parent=1 // pred_check_branch
      %114 = sbr.rel (0) target = $region49
    $region48: #{tpu_custom_call.1} parent=1 // pred_region
      _
    $region49: #{tpu_custom_call.1} parent=1 // pred_fallthru
      _
    // Predicated region
    $region50: #{tpu_custom_call.1} parent=1 // pred_check
      _
    $region51: #{tpu_custom_call.1} parent=1 // pred_check_branch
      %116 = sbr.rel (0) target = $region53
    $region52: #{tpu_custom_call.1} parent=1 // pred_region
      _
    $region53: #{tpu_custom_call.1} parent=1 // pred_fallthru
      _
    // Predicated region
    $region54: #{tpu_custom_call.1} parent=1 // pred_check
      _
    $region55: #{tpu_custom_call.1} parent=1 // pred_check_branch
      %118 = sbr.rel (0) target = $region57
    $region56: #{tpu_custom_call.1} parent=1 // pred_region
      %119 = dma.done [#allocation4], 128
    $region57: #{tpu_custom_call.1} parent=1 // pred_fallthru
      _
    // Predicated region
    $region58: #{tpu_custom_call.1} parent=1 // pred_check
      _
    $region59: #{tpu_custom_call.1} parent=1 // pred_check_branch
      %121 = sbr.rel (0) target = $region61
    $region60: #{tpu_custom_call.1} parent=1 // pred_region
      %122 = dma.done [#allocation7], 128
    $region61: #{tpu_custom_call.1} parent=1 // pred_fallthru
      _
    // Predicated region
    $region62: #{tpu_custom_call.1} parent=1 // pred_check
      _
    $region63: #{tpu_custom_call.1} parent=1 // pred_check_branch
      %124 = sbr.rel (0) target = $region65
    $region64: #{tpu_custom_call.1} parent=1 // pred_region
      %125 = dma.done [#allocation7], 1024
    $region65: #{tpu_custom_call.1} parent=1 // pred_fallthru
      _
    // Predicated region
    $region66: #{tpu_custom_call.1} parent=1 // pred_check
      _
    $region67: #{tpu_custom_call.1} parent=1 // pred_check_branch
      %127 = sbr.rel (0) target = $region69
    $region68: #{tpu_custom_call.1} parent=1 // pred_region
      %128 = dma.done [#allocation10], 1024
    $region69: #{tpu_custom_call.1} parent=1 // pred_fallthru
      _
    // Predicated region
    $region70: #{tpu_custom_call.1} parent=1 // pred_check
      _
    $region71: #{tpu_custom_call.1} parent=1 // pred_check_branch
      %130 = sbr.rel (0) target = $region73
    $region72: #{tpu_custom_call.1} parent=1 // pred_region
      %131 = dma.done [#allocation10], 1024
    $region73: #{tpu_custom_call.1} parent=1 // pred_fallthru
      _
    // Predicated region
    $region74: #{tpu_custom_call.1} parent=1 // pred_check
      _
    $region75: #{tpu_custom_call.1} parent=1 // pred_check_branch
      %133 = sbr.rel (0) target = $region77
    $region76: #{tpu_custom_call.1} parent=1 // pred_region
      %134 = dma.done [#allocation13], 1024
    $region77: #{tpu_custom_call.1} parent=1 // pred_fallthru
      _
    // Predicated region
    $region78: #{tpu_custom_call.1} parent=1 // pred_check
      _
    $region79: #{tpu_custom_call.1} parent=1 // pred_check_branch
      %136 = sbr.rel (0) target = $region81
    $region80: #{tpu_custom_call.1} parent=1 // pred_region
      %137 = dma.done [#allocation13], 1024
    $region81: #{tpu_custom_call.1} parent=1 // pred_fallthru
      _
    %v139 = vld [vmem:[#allocation3] sm:$0xff]
    %v140 = vld [vmem:[#allocation6] sm:$0xff]
    %v141 = vpack.c.bf16 %v140, %v140
    %v142 = vld [vmem:[#allocation8] sm:$0xf]
    %v143 = vld [vmem:[#allocation8 + $0x4] sm:$0xf]
    %v144 = vld [vmem:[#allocation8 + $0x8] sm:$0xf]
    %v145 = vld [vmem:[#allocation8 + $0xc] sm:$0xf]
    %v146 = vld [vmem:[#allocation8 + $0x10] sm:$0xf]
    %v147 = vld [vmem:[#allocation8 + $0x14] sm:$0xf]
    %v148 = vld [vmem:[#allocation8 + $0x18] sm:$0xf]
    %v149 = vld [vmem:[#allocation8 + $0x1c] sm:$0xf]
    %v150 = vld [vmem:[#allocation8 + $0x20] sm:$0xf]
    %v151 = vld [vmem:[#allocation8 + $0x24] sm:$0xf]
    %v152 = vld [vmem:[#allocation8 + $0x28] sm:$0xf]
    %v153 = vld [vmem:[#allocation8 + $0x2c] sm:$0xf]
    %v154 = vld [vmem:[#allocation8 + $0x30] sm:$0xf]
    %v155 = vld [vmem:[#allocation8 + $0x34] sm:$0xf]
    %v156 = vld [vmem:[#allocation8 + $0x38] sm:$0xf]
    %v157 = vld [vmem:[#allocation8 + $0x3c] sm:$0xf]
    %v158 = vld [vmem:[%s3] sm:$0x1]
    %v160 = vlaneseq
    %v161 = vshrl.u32 %v160, 7
    %v162 = vsub.s32 0, %v161
    %v163 = vrot.slane %v158, %v162
    %v181 = vunpack.c.l.b16 %v142
    %v182 = vunpack.c.l.b16 %v143
    %v183 = vunpack.c.l.b16 %v144
    %v184 = vunpack.c.l.b16 %v145
    %v185 = vunpack.c.l.b16 %v146
    %v186 = vunpack.c.l.b16 %v147
    %v187 = vunpack.c.l.b16 %v148
    %v188 = vunpack.c.l.b16 %v149
    %v189 = vunpack.c.l.b16 %v150
    %v190 = vunpack.c.l.b16 %v151
    %v191 = vunpack.c.l.b16 %v152
    %v192 = vunpack.c.l.b16 %v153
    %v193 = vunpack.c.l.b16 %v154
    %v194 = vunpack.c.l.b16 %v155
    %v195 = vunpack.c.l.b16 %v156
    %v196 = vunpack.c.l.b16 %v157
    %v197 = vpack.c.b16 %v182, %v181
    %v198 = vpack.c.b16 %v184, %v183
    %v199 = vpack.c.b16 %v186, %v185
    %v200 = vpack.c.b16 %v188, %v187
    %v201 = vpack.c.b16 %v190, %v189
    %v202 = vpack.c.b16 %v192, %v191
    %v203 = vpack.c.b16 %v194, %v193
    %v204 = vpack.c.b16 %v196, %v195
    %213 = vmatprep.subr.bf16.mxu0 0
    %214 = vmatpush1.bf16.msra.mxu0 %v197
    %215 = vmatprep.subr.bf16.mxu0 0
    %216 = vmatpush1.bf16.msra.mxu0 %v198
    %217 = vmatprep.subr.bf16.mxu0 0
    %218 = vmatpush1.bf16.msra.mxu0 %v199
    %219 = vmatprep.subr.bf16.mxu0 0
    %220 = vmatpush1.bf16.msra.mxu0 %v200
    %221 = vmatprep.subr.bf16.mxu0 0
    %222 = vmatpush1.bf16.msra.mxu0 %v201
    %223 = vmatprep.subr.bf16.mxu0 0
    %224 = vmatpush1.bf16.msra.mxu0 %v202
    %225 = vmatprep.subr.bf16.mxu0 0
    %226 = vmatpush1.bf16.msra.mxu0 %v203
    %227 = vmatprep.subr.bf16.mxu0 0
    %228 = vmatpush1.bf16.msra.mxu0 %v204
    %229 = vmatprep.subr.bf16.mxu0 0
    %230 = vmatpush1.bf16.msra.mxu0 0
    %231 = vmatprep.subr.bf16.mxu0 0
    %232 = vmatpush1.bf16.msra.mxu0 0
    %233 = vmatprep.subr.bf16.mxu0 0
    %234 = vmatpush1.bf16.msra.mxu0 0
    %235 = vmatprep.subr.bf16.mxu0 0
    %236 = vmatpush1.bf16.msra.mxu0 0
    %237 = vmatprep.subr.bf16.mxu0 0
    %238 = vmatpush1.bf16.msra.mxu0 0
    %239 = vmatprep.subr.bf16.mxu0 0
    %240 = vmatpush1.bf16.msra.mxu0 0
    %241 = vmatprep.subr.bf16.mxu0 0
    %242 = vmatpush1.bf16.msra.mxu0 0
    %243 = vmatprep.subr.bf16.mxu0 0
    %244 = vmatpush1.bf16.msra.mxu0 0
    %245 = vmatprep.mubr.bf16.mxu0 0
    %246 = vmatmul.mubr.bf16.gmra.mrb[0].mxu0 %v141
    %v247 = vpop.f32.mrb[0].mxu0
    %v248 = vadd.f32 %v163, %v247
    %v249 = vpop.f32.mrb[0].mxu0
    %v250 = vpop.f32.mrb[0].mxu0
    %v251 = vpop.f32.mrb[0].mxu0
    %252 = vdwg.mxu0
    %v253 = vmax.f32 %v248, 0.0
    %v254 = vpack.c.bf16 %v253, %v253
    %v255 = vld [vmem:[#allocation9] sm:$0xf]
    %v256 = vld [vmem:[#allocation9 + $0x4] sm:$0xf]
    %v257 = vld [vmem:[#allocation9 + $0x8] sm:$0xf]
    %v258 = vld [vmem:[#allocation9 + $0xc] sm:$0xf]
    %v259 = vld [vmem:[#allocation9 + $0x10] sm:$0xf]
    %v260 = vld [vmem:[#allocation9 + $0x14] sm:$0xf]
    %v261 = vld [vmem:[#allocation9 + $0x18] sm:$0xf]
    %v262 = vld [vmem:[#allocation9 + $0x1c] sm:$0xf]
    %v263 = vld [vmem:[#allocation9 + $0x20] sm:$0xf]
    %v264 = vld [vmem:[#allocation9 + $0x24] sm:$0xf]
    %v265 = vld [vmem:[#allocation9 + $0x28] sm:$0xf]
    %v266 = vld [vmem:[#allocation9 + $0x2c] sm:$0xf]
    %v267 = vld [vmem:[#allocation9 + $0x30] sm:$0xf]
    %v268 = vld [vmem:[#allocation9 + $0x34] sm:$0xf]
    %v269 = vld [vmem:[#allocation9 + $0x38] sm:$0xf]
    %v270 = vld [vmem:[#allocation9 + $0x3c] sm:$0xf]
    %v271 = vld [vmem:[%s5] sm:$0x1]
    %v273 = vlaneseq
    %v274 = vshrl.u32 %v273, 7
    %v275 = vsub.s32 0, %v274
    %v276 = vrot.slane %v271, %v275
    %v294 = vunpack.c.l.b16 %v255
    %v295 = vunpack.c.l.b16 %v256
    %v296 = vunpack.c.l.b16 %v257
    %v297 = vunpack.c.l.b16 %v258
    %v298 = vunpack.c.l.b16 %v259
    %v299 = vunpack.c.l.b16 %v260
    %v300 = vunpack.c.l.b16 %v261
    %v301 = vunpack.c.l.b16 %v262
    %v302 = vunpack.c.l.b16 %v263
    %v303 = vunpack.c.l.b16 %v264
    %v304 = vunpack.c.l.b16 %v265
    %v305 = vunpack.c.l.b16 %v266
    %v306 = vunpack.c.l.b16 %v267
    %v307 = vunpack.c.l.b16 %v268
    %v308 = vunpack.c.l.b16 %v269
    %v309 = vunpack.c.l.b16 %v270
    %v310 = vpack.c.b16 %v295, %v294
    %v311 = vpack.c.b16 %v297, %v296
    %v312 = vpack.c.b16 %v299, %v298
    %v313 = vpack.c.b16 %v301, %v300
    %v314 = vpack.c.b16 %v303, %v302
    %v315 = vpack.c.b16 %v305, %v304
    %v316 = vpack.c.b16 %v307, %v306
    %v317 = vpack.c.b16 %v309, %v308
    %326 = vmatprep.subr.bf16.mxu0 0
    %327 = vmatpush1.bf16.msra.mxu0 %v310
    %328 = vmatprep.subr.bf16.mxu0 0
    %329 = vmatpush1.bf16.msra.mxu0 %v311
    %330 = vmatprep.subr.bf16.mxu0 0
    %331 = vmatpush1.bf16.msra.mxu0 %v312
    %332 = vmatprep.subr.bf16.mxu0 0
    %333 = vmatpush1.bf16.msra.mxu0 %v313
    %334 = vmatprep.subr.bf16.mxu0 0
    %335 = vmatpush1.bf16.msra.mxu0 %v314
    %336 = vmatprep.subr.bf16.mxu0 0
    %337 = vmatpush1.bf16.msra.mxu0 %v315
    %338 = vmatprep.subr.bf16.mxu0 0
    %339 = vmatpush1.bf16.msra.mxu0 %v316
    %340 = vmatprep.subr.bf16.mxu0 0
    %341 = vmatpush1.bf16.msra.mxu0 %v317
    %342 = vmatprep.subr.bf16.mxu0 0
    %343 = vmatpush1.bf16.msra.mxu0 0
    %344 = vmatprep.subr.bf16.mxu0 0
    %345 = vmatpush1.bf16.msra.mxu0 0
    %346 = vmatprep.subr.bf16.mxu0 0
    %347 = vmatpush1.bf16.msra.mxu0 0
    %348 = vmatprep.subr.bf16.mxu0 0
    %349 = vmatpush1.bf16.msra.mxu0 0
    %350 = vmatprep.subr.bf16.mxu0 0
    %351 = vmatpush1.bf16.msra.mxu0 0
    %352 = vmatprep.subr.bf16.mxu0 0
    %353 = vmatpush1.bf16.msra.mxu0 0
    %354 = vmatprep.subr.bf16.mxu0 0
    %355 = vmatpush1.bf16.msra.mxu0 0
    %356 = vmatprep.subr.bf16.mxu0 0
    %357 = vmatpush1.bf16.msra.mxu0 0
    %358 = vmatprep.mubr.bf16.mxu0 0
    %359 = vmatmul.mubr.bf16.gmra.mrb[0].mxu0 %v254
    %v360 = vpop.f32.mrb[0].mxu0
    %v361 = vadd.f32 %v276, %v360
    %v362 = vpop.f32.mrb[0].mxu0
    %v363 = vpop.f32.mrb[0].mxu0
    %v364 = vpop.f32.mrb[0].mxu0
    %365 = vdwg.mxu0
    %v366 = vpack.c.bf16 %v139, %v139
    %v367 = vld [vmem:[#allocation11] sm:$0xf]
    %v368 = vld [vmem:[#allocation11 + $0x4] sm:$0xf]
    %v369 = vld [vmem:[#allocation11 + $0x8] sm:$0xf]
    %v370 = vld [vmem:[#allocation11 + $0xc] sm:$0xf]
    %v371 = vld [vmem:[#allocation11 + $0x10] sm:$0xf]
    %v372 = vld [vmem:[#allocation11 + $0x14] sm:$0xf]
    %v373 = vld [vmem:[#allocation11 + $0x18] sm:$0xf]
    %v374 = vld [vmem:[#allocation11 + $0x1c] sm:$0xf]
    %v375 = vld [vmem:[#allocation11 + $0x20] sm:$0xf]
    %v376 = vld [vmem:[#allocation11 + $0x24] sm:$0xf]
    %v377 = vld [vmem:[#allocation11 + $0x28] sm:$0xf]
    %v378 = vld [vmem:[#allocation11 + $0x2c] sm:$0xf]
    %v379 = vld [vmem:[#allocation11 + $0x30] sm:$0xf]
    %v380 = vld [vmem:[#allocation11 + $0x34] sm:$0xf]
    %v381 = vld [vmem:[#allocation11 + $0x38] sm:$0xf]
    %v382 = vld [vmem:[#allocation11 + $0x3c] sm:$0xf]
    %v383 = vpack.c.bf16 %v361, %v361
    %v384 = vld [vmem:[#allocation12] sm:$0xf]
    %v385 = vld [vmem:[#allocation12 + $0x4] sm:$0xf]
    %v386 = vld [vmem:[#allocation12 + $0x8] sm:$0xf]
    %v387 = vld [vmem:[#allocation12 + $0xc] sm:$0xf]
    %v388 = vld [vmem:[#allocation12 + $0x10] sm:$0xf]
    %v389 = vld [vmem:[#allocation12 + $0x14] sm:$0xf]
    %v390 = vld [vmem:[#allocation12 + $0x18] sm:$0xf]
    %v391 = vld [vmem:[#allocation12 + $0x1c] sm:$0xf]
    %v392 = vld [vmem:[#allocation12 + $0x20] sm:$0xf]
    %v393 = vld [vmem:[#allocation12 + $0x24] sm:$0xf]
    %v394 = vld [vmem:[#allocation12 + $0x28] sm:$0xf]
    %v395 = vld [vmem:[#allocation12 + $0x2c] sm:$0xf]
    %v396 = vld [vmem:[#allocation12 + $0x30] sm:$0xf]
    %v397 = vld [vmem:[#allocation12 + $0x34] sm:$0xf]
    %v398 = vld [vmem:[#allocation12 + $0x38] sm:$0xf]
    %v399 = vld [vmem:[#allocation12 + $0x3c] sm:$0xf]
    %v416 = vunpack.c.l.b16 %v384
    %v417 = vunpack.c.l.b16 %v385
    %v418 = vunpack.c.l.b16 %v386
    %v419 = vunpack.c.l.b16 %v387
    %v420 = vunpack.c.l.b16 %v388
    %v421 = vunpack.c.l.b16 %v389
    %v422 = vunpack.c.l.b16 %v390
    %v423 = vunpack.c.l.b16 %v391
    %v424 = vunpack.c.l.b16 %v392
    %v425 = vunpack.c.l.b16 %v393
    %v426 = vunpack.c.l.b16 %v394
    %v427 = vunpack.c.l.b16 %v395
    %v428 = vunpack.c.l.b16 %v396
    %v429 = vunpack.c.l.b16 %v397
    %v430 = vunpack.c.l.b16 %v398
    %v431 = vunpack.c.l.b16 %v399
    %v432 = vpack.c.b16 %v417, %v416
    %v433 = vpack.c.b16 %v419, %v418
    %v434 = vpack.c.b16 %v421, %v420
    %v435 = vpack.c.b16 %v423, %v422
    %v436 = vpack.c.b16 %v425, %v424
    %v437 = vpack.c.b16 %v427, %v426
    %v438 = vpack.c.b16 %v429, %v428
    %v439 = vpack.c.b16 %v431, %v430
    %448 = vmatprep.subr.bf16.mxu0 0
    %449 = vmatpush1.bf16.msra.mxu0 %v432
    %450 = vmatprep.subr.bf16.mxu0 0
    %451 = vmatpush1.bf16.msra.mxu0 %v433
    %452 = vmatprep.subr.bf16.mxu0 0
    %453 = vmatpush1.bf16.msra.mxu0 %v434
    %454 = vmatprep.subr.bf16.mxu0 0
    %455 = vmatpush1.bf16.msra.mxu0 %v435
    %456 = vmatprep.subr.bf16.mxu0 0
    %457 = vmatpush1.bf16.msra.mxu0 %v436
    %458 = vmatprep.subr.bf16.mxu0 0
    %459 = vmatpush1.bf16.msra.mxu0 %v437
    %460 = vmatprep.subr.bf16.mxu0 0
    %461 = vmatpush1.bf16.msra.mxu0 %v438
    %462 = vmatprep.subr.bf16.mxu0 0
    %463 = vmatpush1.bf16.msra.mxu0 %v439
    %464 = vmatprep.subr.bf16.mxu0 0
    %465 = vmatpush1.bf16.msra.mxu0 0
    %466 = vmatprep.subr.bf16.mxu0 0
    %467 = vmatpush1.bf16.msra.mxu0 0
    %468 = vmatprep.subr.bf16.mxu0 0
    %469 = vmatpush1.bf16.msra.mxu0 0
    %470 = vmatprep.subr.bf16.mxu0 0
    %471 = vmatpush1.bf16.msra.mxu0 0
    %472 = vmatprep.subr.bf16.mxu0 0
    %473 = vmatpush1.bf16.msra.mxu0 0
    %474 = vmatprep.subr.bf16.mxu0 0
    %475 = vmatpush1.bf16.msra.mxu0 0
    %476 = vmatprep.subr.bf16.mxu0 0
    %477 = vmatpush1.bf16.msra.mxu0 0
    %478 = vmatprep.subr.bf16.mxu0 0
    %479 = vmatpush1.bf16.msra.mxu0 0
    %480 = vmatprep.mubr.bf16.mxu0 0
    %481 = vmatmul.mubr.bf16.gmra.mrb[0].mxu0 %v383
    %v482 = vpop.f32.mrb[0].mxu0
    %v483 = vadd.f32 0.0, %v482
    %v484 = vpop.f32.mrb[0].mxu0
    %v485 = vpop.f32.mrb[0].mxu0
    %v486 = vpop.f32.mrb[0].mxu0
    %487 = vdwg.mxu0
    %v504 = vunpack.c.l.b16 %v367
    %v505 = vunpack.c.l.b16 %v368
    %v506 = vunpack.c.l.b16 %v369
    %v507 = vunpack.c.l.b16 %v370
    %v508 = vunpack.c.l.b16 %v371
    %v509 = vunpack.c.l.b16 %v372
    %v510 = vunpack.c.l.b16 %v373
    %v511 = vunpack.c.l.b16 %v374
    %v512 = vunpack.c.l.b16 %v375
    %v513 = vunpack.c.l.b16 %v376
    %v514 = vunpack.c.l.b16 %v377
    %v515 = vunpack.c.l.b16 %v378
    %v516 = vunpack.c.l.b16 %v379
    %v517 = vunpack.c.l.b16 %v380
    %v518 = vunpack.c.l.b16 %v381
    %v519 = vunpack.c.l.b16 %v382
    %v520 = vpack.c.b16 %v505, %v504
    %v521 = vpack.c.b16 %v507, %v506
    %v522 = vpack.c.b16 %v509, %v508
    %v523 = vpack.c.b16 %v511, %v510
    %v524 = vpack.c.b16 %v513, %v512
    %v525 = vpack.c.b16 %v515, %v514
    %v526 = vpack.c.b16 %v517, %v516
    %v527 = vpack.c.b16 %v519, %v518
    %536 = vmatprep.subr.bf16.mxu0 0
    %537 = vmatpush1.bf16.msra.mxu0 %v520
    %538 = vmatprep.subr.bf16.mxu0 0
    %539 = vmatpush1.bf16.msra.mxu0 %v521
    %540 = vmatprep.subr.bf16.mxu0 0
    %541 = vmatpush1.bf16.msra.mxu0 %v522
    %542 = vmatprep.subr.bf16.mxu0 0
    %543 = vmatpush1.bf16.msra.mxu0 %v523
    %544 = vmatprep.subr.bf16.mxu0 0
    %545 = vmatpush1.bf16.msra.mxu0 %v524
    %546 = vmatprep.subr.bf16.mxu0 0
    %547 = vmatpush1.bf16.msra.mxu0 %v525
    %548 = vmatprep.subr.bf16.mxu0 0
    %549 = vmatpush1.bf16.msra.mxu0 %v526
    %550 = vmatprep.subr.bf16.mxu0 0
    %551 = vmatpush1.bf16.msra.mxu0 %v527
    %552 = vmatprep.subr.bf16.mxu0 0
    %553 = vmatpush1.bf16.msra.mxu0 0
    %554 = vmatprep.subr.bf16.mxu0 0
    %555 = vmatpush1.bf16.msra.mxu0 0
    %556 = vmatprep.subr.bf16.mxu0 0
    %557 = vmatpush1.bf16.msra.mxu0 0
    %558 = vmatprep.subr.bf16.mxu0 0
    %559 = vmatpush1.bf16.msra.mxu0 0
    %560 = vmatprep.subr.bf16.mxu0 0
    %561 = vmatpush1.bf16.msra.mxu0 0
    %562 = vmatprep.subr.bf16.mxu0 0
    %563 = vmatpush1.bf16.msra.mxu0 0
    %564 = vmatprep.subr.bf16.mxu0 0
    %565 = vmatpush1.bf16.msra.mxu0 0
    %566 = vmatprep.subr.bf16.mxu0 0
    %567 = vmatpush1.bf16.msra.mxu0 0
    %568 = vmatprep.mubr.bf16.mxu0 0
    %569 = vmatmul.mubr.bf16.gmra.mrb[0].mxu0 %v366
    %v570 = vpop.f32.mrb[0].mxu0
    %v571 = vadd.f32 %v483, %v570
    %v572 = vpop.f32.mrb[0].mxu0
    %v573 = vpop.f32.mrb[0].mxu0
    %v574 = vpop.f32.mrb[0].mxu0
    %575 = vdwg.mxu0
    %v576 = vld [vmem:[%s8] sm:$0x1]
    %v578 = vlaneseq
    %v579 = vshrl.u32 %v578, 7
    %v580 = vsub.s32 0, %v579
    %v581 = vrot.slane %v576, %v580
    %v583 = vadd.f32 %v571, %v581
    %v584 = vmax.f32 %v583, 0.0
    %v585 = vpack.c.bf16 %v584, %v584
    %v586 = vld [vmem:[#allocation14] sm:$0xf]
    %v587 = vld [vmem:[#allocation14 + $0x4] sm:$0xf]
    %v588 = vld [vmem:[#allocation14 + $0x8] sm:$0xf]
    %v589 = vld [vmem:[#allocation14 + $0xc] sm:$0xf]
    %v590 = vld [vmem:[#allocation14 + $0x10] sm:$0xf]
    %v591 = vld [vmem:[#allocation14 + $0x14] sm:$0xf]
    %v592 = vld [vmem:[#allocation14 + $0x18] sm:$0xf]
    %v593 = vld [vmem:[#allocation14 + $0x1c] sm:$0xf]
    %v594 = vld [vmem:[#allocation14 + $0x20] sm:$0xf]
    %v595 = vld [vmem:[#allocation14 + $0x24] sm:$0xf]
    %v596 = vld [vmem:[#allocation14 + $0x28] sm:$0xf]
    %v597 = vld [vmem:[#allocation14 + $0x2c] sm:$0xf]
    %v598 = vld [vmem:[#allocation14 + $0x30] sm:$0xf]
    %v599 = vld [vmem:[#allocation14 + $0x34] sm:$0xf]
    %v600 = vld [vmem:[#allocation14 + $0x38] sm:$0xf]
    %v601 = vld [vmem:[#allocation14 + $0x3c] sm:$0xf]
    %v602 = vld [vmem:[%s10] sm:$0x1]
    %v604 = vlaneseq
    %v605 = vshrl.u32 %v604, 7
    %v606 = vsub.s32 0, %v605
    %v607 = vrot.slane %v602, %v606
    %v625 = vunpack.c.l.b16 %v586
    %v626 = vunpack.c.l.b16 %v587
    %v627 = vunpack.c.l.b16 %v588
    %v628 = vunpack.c.l.b16 %v589
    %v629 = vunpack.c.l.b16 %v590
    %v630 = vunpack.c.l.b16 %v591
    %v631 = vunpack.c.l.b16 %v592
    %v632 = vunpack.c.l.b16 %v593
    %v633 = vunpack.c.l.b16 %v594
    %v634 = vunpack.c.l.b16 %v595
    %v635 = vunpack.c.l.b16 %v596
    %v636 = vunpack.c.l.b16 %v597
    %v637 = vunpack.c.l.b16 %v598
    %v638 = vunpack.c.l.b16 %v599
    %v639 = vunpack.c.l.b16 %v600
    %v640 = vunpack.c.l.b16 %v601
    %v641 = vpack.c.b16 %v626, %v625
    %v642 = vpack.c.b16 %v628, %v627
    %v643 = vpack.c.b16 %v630, %v629
    %v644 = vpack.c.b16 %v632, %v631
    %v645 = vpack.c.b16 %v634, %v633
    %v646 = vpack.c.b16 %v636, %v635
    %v647 = vpack.c.b16 %v638, %v637
    %v648 = vpack.c.b16 %v640, %v639
    %657 = vmatprep.subr.bf16.mxu0 0
    %658 = vmatpush1.bf16.msra.mxu0 %v641
    %659 = vmatprep.subr.bf16.mxu0 0
    %660 = vmatpush1.bf16.msra.mxu0 %v642
    %661 = vmatprep.subr.bf16.mxu0 0
    %662 = vmatpush1.bf16.msra.mxu0 %v643
    %663 = vmatprep.subr.bf16.mxu0 0
    %664 = vmatpush1.bf16.msra.mxu0 %v644
    %665 = vmatprep.subr.bf16.mxu0 0
    %666 = vmatpush1.bf16.msra.mxu0 %v645
    %667 = vmatprep.subr.bf16.mxu0 0
    %668 = vmatpush1.bf16.msra.mxu0 %v646
    %669 = vmatprep.subr.bf16.mxu0 0
    %670 = vmatpush1.bf16.msra.mxu0 %v647
    %671 = vmatprep.subr.bf16.mxu0 0
    %672 = vmatpush1.bf16.msra.mxu0 %v648
    %673 = vmatprep.subr.bf16.mxu0 0
    %674 = vmatpush1.bf16.msra.mxu0 0
    %675 = vmatprep.subr.bf16.mxu0 0
    %676 = vmatpush1.bf16.msra.mxu0 0
    %677 = vmatprep.subr.bf16.mxu0 0
    %678 = vmatpush1.bf16.msra.mxu0 0
    %679 = vmatprep.subr.bf16.mxu0 0
    %680 = vmatpush1.bf16.msra.mxu0 0
    %681 = vmatprep.subr.bf16.mxu0 0
    %682 = vmatpush1.bf16.msra.mxu0 0
    %683 = vmatprep.subr.bf16.mxu0 0
    %684 = vmatpush1.bf16.msra.mxu0 0
    %685 = vmatprep.subr.bf16.mxu0 0
    %686 = vmatpush1.bf16.msra.mxu0 0
    %687 = vmatprep.subr.bf16.mxu0 0
    %688 = vmatpush1.bf16.msra.mxu0 0
    %689 = vmatprep.mubr.bf16.mxu0 0
    %690 = vmatmul.mubr.bf16.gmra.mrb[0].mxu0 %v585
    %v691 = vpop.f32.mrb[0].mxu0
    %v692 = vadd.f32 %v607, %v691
    %v693 = vpop.f32.mrb[0].mxu0
    %v694 = vpop.f32.mrb[0].mxu0
    %v695 = vpop.f32.mrb[0].mxu0
    %696 = vdwg.mxu0
    %v697 = vmax.f32 %v692, 0.0
    %v698 = vld [vmem:[%s11] sm:$0x1]
    %v700 = vlaneseq
    %v701 = vshrl.u32 %v700, 7
    %v702 = vsub.s32 0, %v701
    %v703 = vrot.slane %v698, %v702
    %v705 = vmul.f32 %v697, %v703
    %706 = vadd.xlane.f32.xlu0 %v705
    %v707 = vpop.xlane.xlu0 %706
    %v708 = vld [vmem:[#allocation2] sm:$0x1]
    %v710 = vlaneseq
    %v711 = vshrl.u32 %v710, 7
    %v712 = vsub.s32 0, %v711
    %v713 = vrot.slane %v708, %v712
    %v715 = vadd.f32 %v707, %v713
    %717 = vset.pattern.permute.xlu0 0
    %718 = vperm.xlu0 %717, %v715
    %v719 = vpop.permute.xlu0 %718
    %721 = vst [vmem:[#allocation15] sm:$0xff] %v719
    // Predicated region
    $region82: #{tpu_custom_call.1} parent=1 // pred_check
      _
    $region83: #{tpu_custom_call.1} parent=1 // pred_check_branch
      %723 = sbr.rel (0) target = $region85
    $region84: #{tpu_custom_call.1} parent=1 // pred_region
      %s725 = ssub.s32 128, 128
      %726 = vsyncadd [#allocation5], %s725
      %s728 = sshll.u32 [#allocation15], 4
      %s729 = int_to_ptr.vmem [resolvable:$true] %s728
      %731 = dma.vmem_to_hbm [thread:$0]  %s729, 128, %s13, [#allocation5]
    $region85: #{tpu_custom_call.1} parent=1 // pred_fallthru
      _
    // Predicated region
    $region86: #{tpu_custom_call.1} parent=1 // pred_check
      _
    $region87: #{tpu_custom_call.1} parent=1 // pred_check_branch
      %733 = sbr.rel (0) target = $region89
    $region88: #{tpu_custom_call.1} parent=1 // pred_region
      %734 = dma.done [#allocation5], 128
    $region89: #{tpu_custom_call.1} parent=1 // pred_fallthru
      _
    %735 = vsyncpa [#allocation4], 1
    %736 = vsyncpa [#allocation7], 1
    %737 = vsyncpa [#allocation10], 1
    %738 = vsyncpa [#allocation13], 1
    %739 = vsyncpa [#allocation5], 1

</llo_original>
